<compile_context>
chip_gen: v7x
topology: tpu7x:2x2x1
jax: 0.10.0
libtpu: 0.0.40
codegen_flags: <defaults>
</compile_context>

<pallas_src>
import functools

import jax
import jax.numpy as jnp
from jax import lax
from jax.experimental import pallas as pl
from jax.experimental.pallas import tpu as pltpu

_EPS = 1e-12          # torch.nn.functional.normalize default eps
_INV_EPS = 1.0 / _EPS


def _round_up(x, m):
    return ((x + m - 1) // m) * m


def _vmem_capacity_bytes():
    try:
        cap = int(pltpu.get_tpu_info().vmem_capacity_bytes)
        if 16 * 1024 * 1024 <= cap <= 1024 * 1024 * 1024:
            return cap
    except Exception:
        pass
    return 64 * 1024 * 1024  # conservative (v7x-sized) fallback


# --------------------------------------------------------------------------
# Kernels
# --------------------------------------------------------------------------
def _anchor_mean_kernel(a_ref, mean_ref, *, count):
    """Tiled accumulation of the anchor mean (zero-padded rows are neutral)."""
    i = pl.program_id(0)

    @pl.when(i == 0)
    def _():
        mean_ref[...] = jnp.zeros_like(mean_ref)

    mean_ref[...] += jnp.sum(a_ref[...].astype(jnp.float32), axis=0,
                             keepdims=True)

    @pl.when(i == pl.num_programs(0) - 1)
    def _():
        mean_ref[...] = mean_ref[...] / count


def _center_normalize_kernel(mean_ref, rows_ref, out_ref, *, block_rows,
                             valid_rows, mask_rows):
    """Center by the anchor mean + L2-normalize one row tile; emit matmul dtype."""
    r = rows_ref[...].astype(jnp.float32)
    c = r - mean_ref[...]
    sumsq = jnp.sum(c * c, axis=-1, keepdims=True)
    # 1 / max(||c||, eps)  ==  min(rsqrt(sumsq), 1/eps)   (EUP rsqrt, no divide)
    inv = jnp.minimum(lax.rsqrt(sumsq), _INV_EPS)
    normed = c * inv
    if mask_rows:
        row = (pl.program_id(0) * block_rows
               + lax.broadcasted_iota(jnp.int32, normed.shape, 0))
        normed = jnp.where(row < valid_rows, normed, 0.0)
    out_ref[...] = normed.astype(out_ref.dtype)


def _matmul_kernel(xn_ref, an_ref, out_ref):
    """Pure MXU tile: (tn, D) x (ta, D) -> (tn, ta), transpose-free."""
    out_ref[...] = lax.dot_general(
        xn_ref[...], an_ref[...],
        dimension_numbers=(((1,), (1,)), ((), ())),
        preferred_element_type=jnp.float32,
    ).astype(out_ref.dtype)


def _matmul_acc_kernel(xn_ref, an_ref, out_ref, acc_ref):
    """Large-D variant: K grid axis with an f32 VMEM accumulator."""
    k = pl.program_id(2)

    @pl.when(k == 0)
    def _():
        acc_ref[...] = jnp.zeros_like(acc_ref)

    acc_ref[...] += lax.dot_general(
        xn_ref[...], an_ref[...],
        dimension_numbers=(((1,), (1,)), ((), ())),
        preferred_element_type=jnp.float32,
    )

    @pl.when(k == pl.num_programs(2) - 1)
    def _():
        out_ref[...] = acc_ref[...].astype(out_ref.dtype)


# --------------------------------------------------------------------------
# Tile planning
# --------------------------------------------------------------------------
def _plan_tiles(N, A, D, mm_bytes, budget):
    """Return (tile_n, tile_a, tile_k) for the matmul pass."""
    A_pad = _round_up(A, 128)
    D_pad = _round_up(D, 128)

    n8 = _round_up(min(N, 512), 8)
    tn_cands = sorted({128, 256, 512, n8})

    def pad_n(t):
        return _round_up(N, t)

    def key(t):                       # minimize row padding, prefer bigger tile
        return (pad_n(t), -t)

    # Option A: anchors fully VMEM-resident, single K block (loaded once).
    anchors_bytes = 2 * A_pad * D_pad * mm_bytes
    best = None
    for tn in tn_cands:
        need = anchors_bytes + 2 * tn * D_pad * mm_bytes + 2 * tn * A_pad * 4
        if need <= budget and (best is None or key(tn) < key(best)):
            best = tn
    if best is not None:
        return best, A_pad, D_pad

    # Option B: 2-D (N, A) tiling, full feature dim per block.
    for ta in (t for t in (512, 256, 128) if t <= A_pad):
        for tn in sorted(tn_cands, key=key):
            need = (2 * ta * D_pad * mm_bytes + 2 * tn * D_pad * mm_bytes
                    + 2 * tn * ta * 4)
            if need <= budget:
                return tn, ta, D_pad

    # Option C: large-D fallback — split the contraction dim, accumulate in VMEM.
    for t in (256, 128):
        ta = min(t, A_pad)
        tn = t if N >= t else n8
        for tk in (2048, 1024, 512, 256, 128):
            if tk >= D_pad:
                continue
            need = (2 * tn * tk * mm_bytes + 2 * ta * tk * mm_bytes
                    + 3 * tn * ta * 4)           # 2 out bufs + 1 acc scratch
            if need <= budget:
                return tn, ta, tk
    return 128, 128, 128


def _prep_row_tile(rows_pad, D_pad, mm_bytes, budget):
    """Row-tile for the prep passes: must divide rows_pad and fit the budget."""
    cands = []
    if rows_pad <= 512:
        cands.append(rows_pad)
    cands += [t for t in (512, 256, 128, 64, 32, 16, 8)
              if t < rows_pad and rows_pad % t == 0]
    for t in cands:
        need = 2 * t * D_pad * 4 + 2 * t * D_pad * mm_bytes + 2 * D_pad * 4
        if need <= budget:
            return t
    return cands[-1] if cands else rows_pad


# --------------------------------------------------------------------------
# Forward pass
# --------------------------------------------------------------------------
def relative_module_forward(x, anchors, *, matmul_dtype=jnp.bfloat16):
    """x: [N, D], anchors: [A, D] -> [N, A] cosine relative representation."""
    N, D = x.shape
    A, D2 = anchors.shape
    assert D == D2, "feature dims must match"

    x = x.astype(jnp.float32)
    anchors = anchors.astype(jnp.float32)

    mm_bytes = jnp.dtype(matmul_dtype).itemsize
    vmem_cap = _vmem_capacity_bytes()
    budget = int(vmem_cap * 0.65)       # planning budget (double-buffered tiles)
    vmem_limit = int(vmem_cap * 0.85)   # scoped-VMEM limit handed to Mosaic

    tile_n, tile_a, tile_k = _plan_tiles(N, A, D, mm_bytes, budget)

    N_pad = _round_up(N, tile_n)
    A_pad = _round_up(A, tile_a)
    D_pad = _round_up(D, tile_k)

    # Single pad per array (rows + features collapsed). Zero feature columns
    # are exactly neutral for the mean / norms / dot product; padded rows are
    # zeroed again after normalization so they never leak into the output.
    if (N_pad, D_pad) != (N, D):
        x = jnp.pad(x, ((0, N_pad - N), (0, D_pad - D)))
    if (A_pad, D_pad) != (A, D):
        anchors = jnp.pad(anchors, ((0, A_pad - A), (0, D_pad - D)))

    # ---- Pass 1: anchor mean (tiled reduction over A). ----
    pa = _prep_row_tile(A_pad, D_pad, mm_bytes, budget)
    mean = pl.pallas_call(
        functools.partial(_anchor_mean_kernel, count=float(A)),
        grid=(A_pad // pa,),
        out_shape=jax.ShapeDtypeStruct((1, D_pad), jnp.float32),
        in_specs=[pl.BlockSpec((pa, D_pad), lambda i: (i, 0))],
        out_specs=pl.BlockSpec((1, D_pad), lambda i: (0, 0)),
        compiler_params=pltpu.CompilerParams(
            dimension_semantics=("arbitrary",), vmem_limit_bytes=vmem_limit),
    )(anchors)

    # ---- Pass 2: anchors -> centered + normalized, stored in matmul_dtype. ----
    a_n = pl.pallas_call(
        functools.partial(_center_normalize_kernel, block_rows=pa,
                          valid_rows=A, mask_rows=(A_pad != A)),
        grid=(A_pad // pa,),
        out_shape=jax.ShapeDtypeStruct((A_pad, D_pad), matmul_dtype),
        in_specs=[pl.BlockSpec((1, D_pad), lambda i: (0, 0)),
                  pl.BlockSpec((pa, D_pad), lambda i: (i, 0))],
        out_specs=pl.BlockSpec((pa, D_pad), lambda i: (i, 0)),
        compiler_params=pltpu.CompilerParams(
            dimension_semantics=("parallel",), vmem_limit_bytes=vmem_limit),
    )(mean, anchors)

    # ---- Pass 3: x -> centered + normalized ONCE, stored in matmul_dtype. ----
    px = _prep_row_tile(N_pad, D_pad, mm_bytes, budget)
    x_n = pl.pallas_call(
        functools.partial(_center_normalize_kernel, block_rows=px,
                          valid_rows=N, mask_rows=(N_pad != N)),
        grid=(N_pad // px,),
        out_shape=jax.ShapeDtypeStruct((N_pad, D_pad), matmul_dtype),
        in_specs=[pl.BlockSpec((1, D_pad), lambda i: (0, 0)),
                  pl.BlockSpec((px, D_pad), lambda i: (i, 0))],
        out_specs=pl.BlockSpec((px, D_pad), lambda i: (i, 0)),
        compiler_params=pltpu.CompilerParams(
            dimension_semantics=("parallel",), vmem_limit_bytes=vmem_limit),
    )(mean, x)

    # ---- Pass 4: pure-MXU similarity matmul. ----
    if tile_k == D_pad:
        out = pl.pallas_call(
            _matmul_kernel,
            out_shape=jax.ShapeDtypeStruct((N_pad, A_pad), jnp.float32),
            grid_spec=pltpu.PrefetchScalarGridSpec(
                num_scalar_prefetch=0,
                grid=(N_pad // tile_n, A_pad // tile_a),
                in_specs=[
                    pl.BlockSpec((tile_n, D_pad), lambda i, j: (i, 0)),
                    pl.BlockSpec((tile_a, D_pad), lambda i, j: (j, 0)),
                ],
                out_specs=pl.BlockSpec((tile_n, tile_a), lambda i, j: (i, j)),
            ),
            compiler_params=pltpu.CompilerParams(
                dimension_semantics=("parallel", "parallel"),
                vmem_limit_bytes=vmem_limit),
        )(x_n, a_n)
    else:
        out = pl.pallas_call(
            _matmul_acc_kernel,
            out_shape=jax.ShapeDtypeStruct((N_pad, A_pad), jnp.float32),
            grid_spec=pltpu.PrefetchScalarGridSpec(
                num_scalar_prefetch=0,
                grid=(N_pad // tile_n, A_pad // tile_a, D_pad // tile_k),
                in_specs=[
                    pl.BlockSpec((tile_n, tile_k), lambda i, j, k: (i, k)),
                    pl.BlockSpec((tile_a, tile_k), lambda i, j, k: (j, k)),
                ],
                out_specs=pl.BlockSpec((tile_n, tile_a), lambda i, j, k: (i, j)),
                scratch_shapes=[pltpu.VMEM((tile_n, tile_a), jnp.float32)],
            ),
            compiler_params=pltpu.CompilerParams(
                dimension_semantics=("parallel", "parallel", "arbitrary"),
                vmem_limit_bytes=vmem_limit),
        )(x_n, a_n)

    return out[:N, :A]


# --------------------------------------------------------------------------
# Reference + demo
# --------------------------------------------------------------------------
def _reference(x, anchors):
    mean = jnp.mean(anchors, axis=0, keepdims=True)
    xc = x - mean
    ac = anchors - mean
    xn = xc / jnp.maximum(jnp.linalg.norm(xc, axis=-1, keepdims=True), _EPS)
    an = ac / jnp.maximum(jnp.linalg.norm(ac, axis=-1, keepdims=True), _EPS)
    return xn @ an.T


if __name__ == "__main__":
    key = jax.random.PRNGKey(0)
    kx, ka = jax.random.split(key)

    N, A, D = 16, 8, 32  # small demo: 16 samples, 8 anchors, hidden=32
    x = jax.random.normal(kx, (N, D), dtype=jnp.float32)
    anchors = jax.random.normal(ka, (A, D), dtype=jnp.float32)

    ref = _reference(x, anchors)

    # Strict-parity mode (f32 MXU inputs).
    out_f32 = relative_module_forward(x, anchors, matmul_dtype=jnp.float32)
    jax.block_until_ready(out_f32)
    assert out_f32.shape == (N, A)
    assert jnp.allclose(out_f32, ref, atol=1e-5, rtol=1e-5), "f32 mismatch vs reference"

    # Default fast mode (bf16 MXU inputs) — cosine outputs stay within ~1e-2.
    out_bf16 = relative_module_forward(x, anchors)
    jax.block_until_ready(out_bf16)
    assert out_bf16.shape == (N, A)
    assert jnp.allclose(out_bf16, ref, atol=1.5e-2, rtol=0.0), "bf16 mismatch vs reference"

    print("KERNEL_OK")
</pallas_src>

<mosaic_0001>
module attributes {stable_mosaic.version = 11 : i64} {
  func.func @_anchor_mean_kernel(%arg0: i32, %arg1: memref<128x128xf32, #tpu.memory_space<vmem>>, %arg2: memref<1x128xf32, #tpu.memory_space<vmem>>) attributes {dimension_semantics = [#tpu.dimension_semantics<arbitrary>], iteration_bounds = array<i64: 1>, scalar_prefetch = 0 : i64, scratch_operands = 0 : i64, tpu.core_type = #tpu.core_type<tc>, window_params = [{transform_indices = @transform_0, window_bounds = array<i64: 128, 128>}, {pipeline_mode = #tpu.pipeline_mode<synchronous>, transform_indices = @transform_1, window_bounds = array<i64: 1, 128>}]} {
    %c0_i32 = arith.constant 0 : i32
    %0 = arith.cmpi eq, %arg0, %c0_i32 : i32
    %1 = arith.extui %0 : i1 to i32
    %c0_i32_0 = arith.constant 0 : i32
    %2 = arith.cmpi ne, %1, %c0_i32_0 : i32
    scf.if %2 {
      %cst_8 = arith.constant 0.000000e+00 : f32
      %12 = vector.broadcast %cst_8 : f32 to vector<1x128xf32>
      %c0_9 = arith.constant 0 : index
      %c0_10 = arith.constant 0 : index
      %13 = vector.load %arg2[%c0_9, %c0_10] : memref<1x128xf32, #tpu.memory_space<vmem>>, vector<1x128xf32>
      tpu.vector_store %arg2[%c0_9, %c0_10], %12 {strides = array<i32>} : memref<1x128xf32, #tpu.memory_space<vmem>>, vector<1x128xf32>,
    } else {
    }
    %c0 = arith.constant 0 : index
    %c0_1 = arith.constant 0 : index
    %3 = vector.load %arg2[%c0, %c0_1] : memref<1x128xf32, #tpu.memory_space<vmem>>, vector<1x128xf32>
    %c0_2 = arith.constant 0 : index
    %c0_3 = arith.constant 0 : index
    %4 = vector.load %arg1[%c0_2, %c0_3] : memref<128x128xf32, #tpu.memory_space<vmem>>, vector<128x128xf32>
    %cst = arith.constant dense<0.000000e+00> : vector<128xf32>
    %5 = vector.multi_reduction <add>, %4, %cst [0] : vector<128x128xf32> to vector<128xf32>
    %6 = vector.shape_cast %5 : vector<128xf32> to vector<1x128xf32>
    %7 = arith.addf %3, %6 : vector<1x128xf32>
    %c0_4 = arith.constant 0 : index
    %c0_5 = arith.constant 0 : index
    %8 = vector.load %arg2[%c0_4, %c0_5] : memref<1x128xf32, #tpu.memory_space<vmem>>, vector<1x128xf32>
    tpu.vector_store %arg2[%c0_4, %c0_5], %7 {strides = array<i32>} : memref<1x128xf32, #tpu.memory_space<vmem>>, vector<1x128xf32>,
    %c0_i32_6 = arith.constant 0 : i32
    %9 = arith.cmpi eq, %arg0, %c0_i32_6 : i32
    %10 = arith.extui %9 : i1 to i32
    %c0_i32_7 = arith.constant 0 : i32
    %11 = arith.cmpi ne, %10, %c0_i32_7 : i32
    scf.if %11 {
      %c0_8 = arith.constant 0 : index
      %c0_9 = arith.constant 0 : index
      %12 = vector.load %arg2[%c0_8, %c0_9] : memref<1x128xf32, #tpu.memory_space<vmem>>, vector<1x128xf32>
      %cst_10 = arith.constant 8.000000e+00 : f32
      %13 = vector.broadcast %cst_10 : f32 to vector<1x128xf32>
      %14 = arith.divf %12, %13 : vector<1x128xf32>
      %c0_11 = arith.constant 0 : index
      %c0_12 = arith.constant 0 : index
      %15 = vector.load %arg2[%c0_11, %c0_12] : memref<1x128xf32, #tpu.memory_space<vmem>>, vector<1x128xf32>
      tpu.vector_store %arg2[%c0_11, %c0_12], %14 {strides = array<i32>} : memref<1x128xf32, #tpu.memory_space<vmem>>, vector<1x128xf32>,
    } else {
    }
    return
  }
  func.func @transform_0(%arg0: i32) -> (i32, i32) {
    %c0_i32 = arith.constant 0 : i32
    %c0_i32_0 = arith.constant 0 : i32
    return %arg0, %c0_i32 : i32, i32
  }
  func.func @transform_1(%arg0: i32) -> (i32, i32) {
    %c0_i32 = arith.constant 0 : i32
    %c0_i32_0 = arith.constant 0 : i32
    %c0_i32_1 = arith.constant 0 : i32
    return %c0_i32, %c0_i32_0 : i32, i32
  }
}

</mosaic_0001>

<llo_original>
// kernel: tpu_custom_call.1
$region0: #{tpu_custom_call.1}
  #allocation0 [shape = 'u32[]', space=smem, size = 0x4, offset = 0x4, fixed_abs, tag = 'smem constant byte address 0x4 - core index']
  #allocation1 [shape = 'u32[144,128]{1,0:T(1,128)}', space=vmem, size = 0x12000, scoped, tag = 'internal scratch']
  %s0 = inlined_call_operand.hbm [shape: f32[128,128], index: 0, kind: input, shape index: {}]
  %s1 = inlined_call_operand.hbm [shape: f32[1,128], index: 1, kind: output, shape index: {}]
  %s2 = sld [smem:[#allocation0]]
  $region26: #{tpu_custom_call.1} parent=0
    _
  %s4 = ssub.s32 1, %s2
  %s5 = scalar_select 0, %s4, %s2
  $region1: #{tpu_custom_call.1} parent=0
    #allocation2 [shape = 'u8[65536]{0}', space=vmem, size = 0x10000, scoped, tag = 'input window, operand 0, single buffered']
    #allocation3 [shape = 's32[1]{0}', space=sflag, size = 0x4, scoped, tag = 'scoped memory for tpu_custom_call.1']
    #allocation4 [shape = 's32[1]{0}', space=sflag, size = 0x4, scoped, tag = 'scoped memory for tpu_custom_call.1']
    #allocation5 [shape = 'u8[512]{0}', space=vmem, size = 0x400, scoped, tag = 'output window, operand 0, single buffered']
    %6 = vsyncpa [#allocation3], 0
    %7 = vsyncpa [#allocation4], 0
    // Predicated region
    $region2: #{tpu_custom_call.1} parent=1 // pred_check
      _
    $region3: #{tpu_custom_call.1} parent=1 // pred_check_branch
      %9 = sbr.rel (0) target = $region5
    $region4: #{tpu_custom_call.1} parent=1 // pred_region
      %s11 = ssub.s32 2048, 2048
      %12 = vsyncadd [#allocation3], %s11
      %s13 = sshll.u32 [#allocation2], 4
      %s14 = int_to_ptr.vmem [resolvable:$true] %s13
      %19 = dma.hbm_to_vmem [thread:$0]  %s0, 2048, %s14, [#allocation3], 128, 128, 8
    $region5: #{tpu_custom_call.1} parent=1 // pred_fallthru
      _
    // Predicated region
    $region6: #{tpu_custom_call.1} parent=1 // pred_check
      _
    $region7: #{tpu_custom_call.1} parent=1 // pred_check_branch
      %21 = sbr.rel (0) target = $region9
    $region8: #{tpu_custom_call.1} parent=1 // pred_region
      %22 = dma.done [#allocation3], 2048
    $region9: #{tpu_custom_call.1} parent=1 // pred_fallthru
      _
    %p23 = scmp.eq.s32.totalorder 0, 0
    // Predicated region
    $region10: #{tpu_custom_call.1} parent=1 // pred_check
      %p24 = pneg %p23
    $region11: #{tpu_custom_call.1} parent=1 // pred_check_branch
      %26 = sbr.rel (%p24) target = $region13
    $region12: #{tpu_custom_call.1} parent=1 // pred_region
      %27 = vst [vmem:[#allocation5] sm:$0x1] 0.0
    $region13: #{tpu_custom_call.1} parent=1 // pred_fallthru
      _
    %v28 = vld [vmem:[#allocation5] sm:$0x1]
    %v29 = vld [vmem:[#allocation2] sm:$0xff]
    %v30 = vld [vmem:[#allocation2 + $0x8] sm:$0xff]
    %v31 = vld [vmem:[#allocation2 + $0x10] sm:$0xff]
    %v32 = vld [vmem:[#allocation2 + $0x18] sm:$0xff]
    %v33 = vld [vmem:[#allocation2 + $0x20] sm:$0xff]
    %v34 = vld [vmem:[#allocation2 + $0x28] sm:$0xff]
    %v35 = vld [vmem:[#allocation2 + $0x30] sm:$0xff]
    %v36 = vld [vmem:[#allocation2 + $0x38] sm:$0xff]
    %v37 = vld [vmem:[#allocation2 + $0x40] sm:$0xff]
    %v38 = vld [vmem:[#allocation2 + $0x48] sm:$0xff]
    %v39 = vld [vmem:[#allocation2 + $0x50] sm:$0xff]
    %v40 = vld [vmem:[#allocation2 + $0x58] sm:$0xff]
    %v41 = vld [vmem:[#allocation2 + $0x60] sm:$0xff]
    %v42 = vld [vmem:[#allocation2 + $0x68] sm:$0xff]
    %v43 = vld [vmem:[#allocation2 + $0x70] sm:$0xff]
    %v44 = vld [vmem:[#allocation2 + $0x78] sm:$0xff]
    %v45 = vadd.f32 %v29, %v30
    %v46 = vadd.f32 %v45, %v31
    %v47 = vadd.f32 %v46, %v32
    %v48 = vadd.f32 %v47, %v33
    %v49 = vadd.f32 %v48, %v34
    %v50 = vadd.f32 %v49, %v35
    %v51 = vadd.f32 %v50, %v36
    %v52 = vadd.f32 %v51, %v37
    %v53 = vadd.f32 %v52, %v38
    %v54 = vadd.f32 %v53, %v39
    %v55 = vadd.f32 %v54, %v40
    %v56 = vadd.f32 %v55, %v41
    %v57 = vadd.f32 %v56, %v42
    %v58 = vadd.f32 %v57, %v43
    %v59 = vadd.f32 %v58, %v44
    %v60 = vrot.slane %v59, 4
    %v61 = vadd.f32 %v59, %v60
    %v62 = vrot.slane %v61, 2
    %v63 = vadd.f32 %v61, %v62
    %v64 = vrot.slane %v63, 1
    %v65 = vadd.f32 %v63, %v64
    %v66 = vadd.f32 %v28, %v65
    %67 = vst [vmem:[#allocation5] sm:$0x1] %v66
    // Predicated region
    $region14: #{tpu_custom_call.1} parent=1 // pred_check
      %p68 = pneg %p23
    $region15: #{tpu_custom_call.1} parent=1 // pred_check_branch
      %70 = sbr.rel (%p68) target = $region17
    $region16: #{tpu_custom_call.1} parent=1 // pred_region
      %v71 = vld [vmem:[#allocation5] sm:$0x1]
      %v72 = vrcp.pop 8.0
      %v73 = vmul.f32 %v71, %v72
      %74 = vst [vmem:[#allocation5] sm:$0x1] %v73
    $region17: #{tpu_custom_call.1} parent=1 // pred_fallthru
      _
    // Predicated region
    $region18: #{tpu_custom_call.1} parent=1 // pred_check
      _
    $region19: #{tpu_custom_call.1} parent=1 // pred_check_branch
      %76 = sbr.rel (0) target = $region21
    $region20: #{tpu_custom_call.1} parent=1 // pred_region
      %s78 = ssub.s32 16, 16
      %79 = vsyncadd [#allocation4], %s78
      %s81 = sshll.u32 [#allocation5], 4
      %s82 = int_to_ptr.vmem [resolvable:$true] %s81
      %84 = dma.vmem_to_hbm [thread:$0]  %s82, 16, %s1, [#allocation4]
    $region21: #{tpu_custom_call.1} parent=1 // pred_fallthru
      _
    // Predicated region
    $region22: #{tpu_custom_call.1} parent=1 // pred_check
      _
    $region23: #{tpu_custom_call.1} parent=1 // pred_check_branch
      %86 = sbr.rel (0) target = $region25
    $region24: #{tpu_custom_call.1} parent=1 // pred_region
      %87 = dma.done [#allocation4], 16
    $region25: #{tpu_custom_call.1} parent=1 // pred_fallthru
      _
    %88 = vsyncpa [#allocation3], 1
    %89 = vsyncpa [#allocation4], 1

</llo_original>
